<compile_context>
chip_gen: v6e
topology: v6e:2x2x1
jax: 0.10.0
libtpu: 0.0.40
codegen_flags: <defaults>
</compile_context>

<pallas_src>
import functools

import jax
import jax.numpy as jnp
from jax.experimental import pallas as pl
from jax.experimental.pallas import tpu as pltpu


def _round_up(n, m):
    return ((n + m - 1) // m) * m


# ----------------------------------------------------------------------------
# Fused decoder kernel: first conv + num_layers shared-weight mid convs +
# last conv; each layer = (bf16 im2row slab) @ (bf16 scale-folded weight)
# -> f32 accumulator, + bias, ReLU.  Intermediates never touch HBM.
# ----------------------------------------------------------------------------
def _segnet_dec_kernel(x_ref, w1_ref, b1_ref, wm_ref, bm_ref, wl_ref, bl_ref,
                       o_ref, *, H, W, num_layers):
    """Whole SegNetDec for one image.

    x_ref:   (1, Cin_p, L)      f32 input, L = H*W flattened on lanes
    w*_ref:  (Cout_p, 9*Cin_p)  bf16 weights (BN scale folded in),
                                K index = (ky*3 + kx)*Cin_p + c
    b*_ref:  (Cout_p, 1)        f32 folded bias (conv bias + BN shift)
    o_ref:   (1, Cout_p, L)     f32 output
    """
    L = H * W

    # Zero-padding boundary masks for the 9 taps, built ONCE as f32 and reused
    # (as multiplies) by every unrolled layer.  pos = flat index y*W + x.
    pos = jax.lax.broadcasted_iota(jnp.int32, (1, L), 1)
    col = pos % W

    def tap_mask(ky, kx):
        conds = []
        if ky == 0:
            conds.append(pos >= W)                 # needs row y-1 >= 0
        elif ky == 2:
            conds.append(pos < (H - 1) * W)        # needs row y+1 <= H-1
        if kx == 0:
            conds.append(col >= 1)                 # needs col x-1 >= 0
        elif kx == 2:
            conds.append(col <= W - 2)             # needs col x+1 <= W-1
        if not conds:
            return None                            # center tap: always valid
        m = conds[0]
        for c in conds[1:]:
            m = jnp.logical_and(m, c)
        return m.astype(jnp.float32)

    masks = [tap_mask(ky, kx) for ky in range(3) for kx in range(3)]
    shifts = [(ky - 1) * W + (kx - 1) for ky in range(3) for kx in range(3)]

    def conv_bn_relu(x, w_ref_l, b_ref_l):
        # x: (Cin_p, L) f32 activation.  Build the im2row slab (9*Cin_p, L):
        # one lane-roll (XLU) per tap, zeroed at the image boundary by a
        # precomputed mask, stacked along sublanes.
        taps = []
        for t in range(9):
            d = shifts[t]                          # flat source offset
            tap = x if d == 0 else pltpu.roll(x, shift=(-d) % L, axis=1)
            if masks[t] is not None:
                tap = tap * masks[t]
            taps.append(tap)
        slab = jnp.concatenate(taps, axis=0).astype(jnp.bfloat16)
        # Single MXU dot per layer: (Cout_p, 9*Cin_p) @ (9*Cin_p, L) -> f32.
        acc = jnp.dot(w_ref_l[...], slab, preferred_element_type=jnp.float32)
        return jnp.maximum(acc + b_ref_l[...], 0.0)

    h = conv_bn_relu(x_ref[0], w1_ref, b1_ref)
    for _ in range(num_layers):                    # the SAME module repeated
        h = conv_bn_relu(h, wm_ref, bm_ref)        # -> shared weights
    y = conv_bn_relu(h, wl_ref, bl_ref)
    o_ref[0] = y.astype(o_ref.dtype)


# ----------------------------------------------------------------------------
# Wrapper: NCHW in / NCHW out, no transposes (only free reshapes + channel pad).
# ----------------------------------------------------------------------------
def _prep_layer(w_oihw, scale, bias, cin_p, cout_p):
    """Fold BN scale into the conv weight, zero-pad channels, lay the weight
    out as (Cout_p, 9*Cin_p) bf16 with K index = (ky*3 + kx)*Cin_p + c."""
    cout, cin = w_oihw.shape[0], w_oihw.shape[1]
    w = w_oihw * scale[:, None, None, None]                     # fold BN scale
    w = jnp.pad(w, ((0, cout_p - cout), (0, cin_p - cin), (0, 0), (0, 0)))
    w = jnp.transpose(w, (0, 2, 3, 1)).reshape(cout_p, 9 * cin_p)
    b = jnp.pad(bias, (0, cout_p - cout)).reshape(cout_p, 1)
    return w.astype(jnp.bfloat16), b.astype(jnp.float32)


def segnet_dec_forward(params, x_nchw):
    """Fused SegNetDec forward.  Input/output in PyTorch NCHW layout."""
    N, cin, H, W = x_nchw.shape
    L = H * W
    mid = params["first"][0].shape[0]
    cout = params["last"][0].shape[0]
    num_layers = params["num_layers"]

    # Pad channel counts to sublane multiples; padding is zero weights / zero
    # bias so padded channels stay exactly 0 and never affect real outputs.
    cin_p, mid_p, cout_p = (_round_up(c, 8) for c in (cin, mid, cout))

    w1, b1 = _prep_layer(*params["first"], cin_p, mid_p)
    wm, bm = _prep_layer(*params["mid"], mid_p, mid_p)
    wl, bl = _prep_layer(*params["last"], mid_p, cout_p)

    x = x_nchw.reshape(N, cin, L).astype(jnp.float32)
    x = jnp.pad(x, ((0, 0), (0, cin_p - cin), (0, 0)))

    kernel = functools.partial(_segnet_dec_kernel, H=H, W=W,
                               num_layers=num_layers)

    def resident(a):   # whole-array block, constant-indexed across the grid
        nd = a.ndim
        return pl.BlockSpec(a.shape, lambda n, nd=nd: (0,) * nd)

    out = pl.pallas_call(
        kernel,
        out_shape=jax.ShapeDtypeStruct((N, cout_p, L), jnp.float32),
        grid=(N,),
        in_specs=[
            pl.BlockSpec((1, cin_p, L), lambda n: (n, 0, 0)),
            resident(w1), resident(b1),
            resident(wm), resident(bm),
            resident(wl), resident(bl),
        ],
        out_specs=pl.BlockSpec((1, cout_p, L), lambda n: (n, 0, 0)),
        compiler_params=pltpu.CompilerParams(
            dimension_semantics=("parallel",),
            vmem_limit_bytes=32 * 1024 * 1024),
    )(x, w1, b1, wm, bm, wl, bl)
    return out.reshape(N, cout_p, H, W)[:, :cout]


# ----------------------------------------------------------------------------
# Parameter construction (deterministic, in-script; no checkpoint loading).
# ----------------------------------------------------------------------------
def _make_layer_params(key, cin, cout):
    """Conv2d(cin,cout,3,pad=1) + BatchNorm2d(cout), folded for inference."""
    kw, kb, kg, kbeta, km, kv = jax.random.split(key, 6)
    fan_in = cin * 3 * 3
    bound = 1.0 / jnp.sqrt(fan_in)
    w_oihw = jax.random.uniform(kw, (cout, cin, 3, 3), jnp.float32,
                                -bound, bound)
    b_conv = jax.random.uniform(kb, (cout,), jnp.float32, -bound, bound)
    gamma = 1.0 + 0.1 * jax.random.normal(kg, (cout,), jnp.float32)
    beta = 0.1 * jax.random.normal(kbeta, (cout,), jnp.float32)
    run_mean = 0.1 * jax.random.normal(km, (cout,), jnp.float32)
    run_var = jnp.abs(jax.random.normal(kv, (cout,), jnp.float32)) + 0.5
    eps = 1e-5
    scale = gamma / jnp.sqrt(run_var + eps)
    bias = scale * (b_conv - run_mean) + beta
    return w_oihw, scale, bias


def make_segnet_dec_params(key, in_channels, out_channels, num_layers):
    mid = in_channels // 2
    k0, k1, k2 = jax.random.split(key, 3)
    return {"first": _make_layer_params(k0, in_channels, mid),
            "mid": _make_layer_params(k1, mid, mid),   # shared, applied num_layers x
            "last": _make_layer_params(k2, mid, out_channels),
            "num_layers": num_layers}


# ----------------------------------------------------------------------------
# Pure-JAX reference using the SAME bf16-operand / f32-accumulate recipe, so
# the tolerance stays tight despite bf16 MXU operands in the kernel.
# ----------------------------------------------------------------------------
def _ref_layer(x_nchw, w_oihw, scale, bias):
    w = (w_oihw * scale[:, None, None, None]).astype(jnp.bfloat16)
    y = jax.lax.conv_general_dilated(
        x_nchw.astype(jnp.bfloat16), w, window_strides=(1, 1),
        padding=((1, 1), (1, 1)),
        dimension_numbers=("NCHW", "OIHW", "NCHW"),
        preferred_element_type=jnp.float32)
    return jnp.maximum(y + bias[None, :, None, None], 0.0)


def _ref_forward(params, x_nchw):
    x = x_nchw.astype(jnp.float32)
    w, s, b = params["first"]
    x = _ref_layer(x, w, s, b)
    w, s, b = params["mid"]
    for _ in range(params["num_layers"]):
        x = _ref_layer(x, w, s, b)
    w, s, b = params["last"]
    x = _ref_layer(x, w, s, b)
    return x


if __name__ == "__main__":
    key = jax.random.PRNGKey(0)
    k_params, k_x = jax.random.split(key)

    # Small shapes consistent with the module: batch=2, in_channels=4,
    # out_channels=3, num_layers=1, spatial=16x16.
    N, C_IN, C_OUT, NUM_LAYERS, H, W = 2, 4, 3, 1, 16, 16

    params = make_segnet_dec_params(k_params, C_IN, C_OUT, NUM_LAYERS)
    x = jax.random.normal(k_x, (N, C_IN, H, W), jnp.float32)

    fwd = jax.jit(functools.partial(segnet_dec_forward, params))
    out = fwd(x)
    jax.block_until_ready(out)

    ref = _ref_forward(params, x)
    assert out.shape == (N, C_OUT, H, W)
    err = float(jnp.max(jnp.abs(out - ref)))
    assert jnp.allclose(out, ref, rtol=1e-2, atol=1e-2), err

    print("KERNEL_OK")
</pallas_src>

<mosaic_0001>
module attributes {stable_mosaic.version = 11 : i64} {
  func.func @_segnet_dec_kernel(%arg0: i32, %arg1: memref<1x8x256xf32, #tpu.memory_space<vmem>>, %arg2: memref<8x72xbf16, #tpu.memory_space<vmem>>, %arg3: memref<8x1xf32, #tpu.memory_space<vmem>>, %arg4: memref<8x72xbf16, #tpu.memory_space<vmem>>, %arg5: memref<8x1xf32, #tpu.memory_space<vmem>>, %arg6: memref<8x72xbf16, #tpu.memory_space<vmem>>, %arg7: memref<8x1xf32, #tpu.memory_space<vmem>>, %arg8: memref<1x8x256xf32, #tpu.memory_space<vmem>>) attributes {dimension_semantics = [#tpu.dimension_semantics<parallel>], iteration_bounds = array<i64: 2>, scalar_prefetch = 0 : i64, scratch_operands = 0 : i64, tpu.core_type = #tpu.core_type<tc>, window_params = [{transform_indices = @transform_0, window_bounds = array<i64: 1, 8, 256>}, {pipeline_mode = #tpu.pipeline_mode<synchronous>, transform_indices = @transform_1, window_bounds = array<i64: 8, 72>}, {pipeline_mode = #tpu.pipeline_mode<synchronous>, transform_indices = @transform_2, window_bounds = array<i64: 8, 1>}, {pipeline_mode = #tpu.pipeline_mode<synchronous>, transform_indices = @transform_3, window_bounds = array<i64: 8, 72>}, {pipeline_mode = #tpu.pipeline_mode<synchronous>, transform_indices = @transform_4, window_bounds = array<i64: 8, 1>}, {pipeline_mode = #tpu.pipeline_mode<synchronous>, transform_indices = @transform_5, window_bounds = array<i64: 8, 72>}, {pipeline_mode = #tpu.pipeline_mode<synchronous>, transform_indices = @transform_6, window_bounds = array<i64: 8, 1>}, {transform_indices = @transform_7, window_bounds = array<i64: 1, 8, 256>}]} {
    %0 = tpu.iota {dimensions = array<i32: 1>} : vector<1x256xi32>
    %c16_i32 = arith.constant 16 : i32
    %c0_i32 = arith.constant 0 : i32
    %1 = arith.cmpi eq, %c16_i32, %c0_i32 : i32
    %c1_i32 = arith.constant 1 : i32
    %2 = arith.select %1, %c1_i32, %c16_i32 : i32
    %3 = vector.broadcast %2 : i32 to vector<1x256xi32>
    %4 = arith.remsi %0, %3 : vector<1x256xi32>
    %c0_i32_0 = arith.constant 0 : i32
    %5 = vector.broadcast %c0_i32_0 : i32 to vector<1x256xi32>
    %6 = arith.cmpi ne, %4, %5 : vector<1x256xi32>
    %c0_i32_1 = arith.constant 0 : i32
    %7 = vector.broadcast %c0_i32_1 : i32 to vector<1x256xi32>
    %8 = arith.cmpi slt, %4, %7 : vector<1x256xi32>
    %c0_i32_2 = arith.constant 0 : i32
    %9 = arith.cmpi slt, %2, %c0_i32_2 : i32
    %10 = vector.broadcast %9 : i1 to vector<1x256xi1>
    %11 = vector.broadcast %10 : vector<1x256xi1> to vector<1x256xi1>
    %12 = arith.xori %8, %11 : vector<1x256xi1>
    %13 = arith.andi %12, %6 : vector<1x256xi1>
    %14 = vector.broadcast %2 : i32 to vector<1x256xi32>
    %15 = arith.addi %4, %14 : vector<1x256xi32>
    %16 = arith.select %13, %15, %4 : vector<1x256xi1>, vector<1x256xi32>
    %c16_i32_3 = arith.constant 16 : i32
    %17 = vector.broadcast %c16_i32_3 : i32 to vector<1x256xi32>
    %18 = arith.cmpi sge, %0, %17 : vector<1x256xi32>
    %c1_i32_4 = arith.constant 1 : i32
    %19 = vector.broadcast %c1_i32_4 : i32 to vector<1x256xi32>
    %20 = arith.cmpi sge, %16, %19 : vector<1x256xi32>
    %21 = arith.andi %18, %20 : vector<1x256xi1>
    %22 = arith.extui %21 : vector<1x256xi1> to vector<1x256xi32>
    %23 = arith.sitofp %22 : vector<1x256xi32> to vector<1x256xf32>
    %c16_i32_5 = arith.constant 16 : i32
    %24 = vector.broadcast %c16_i32_5 : i32 to vector<1x256xi32>
    %25 = arith.cmpi sge, %0, %24 : vector<1x256xi32>
    %26 = arith.extui %25 : vector<1x256xi1> to vector<1x256xi32>
    %27 = arith.sitofp %26 : vector<1x256xi32> to vector<1x256xf32>
    %c16_i32_6 = arith.constant 16 : i32
    %28 = vector.broadcast %c16_i32_6 : i32 to vector<1x256xi32>
    %29 = arith.cmpi sge, %0, %28 : vector<1x256xi32>
    %c14_i32 = arith.constant 14 : i32
    %30 = vector.broadcast %c14_i32 : i32 to vector<1x256xi32>
    %31 = arith.cmpi sle, %16, %30 : vector<1x256xi32>
    %32 = arith.andi %29, %31 : vector<1x256xi1>
    %33 = arith.extui %32 : vector<1x256xi1> to vector<1x256xi32>
    %34 = arith.sitofp %33 : vector<1x256xi32> to vector<1x256xf32>
    %c1_i32_7 = arith.constant 1 : i32
    %35 = vector.broadcast %c1_i32_7 : i32 to vector<1x256xi32>
    %36 = arith.cmpi sge, %16, %35 : vector<1x256xi32>
    %37 = arith.extui %36 : vector<1x256xi1> to vector<1x256xi32>
    %38 = arith.sitofp %37 : vector<1x256xi32> to vector<1x256xf32>
    %c14_i32_8 = arith.constant 14 : i32
    %39 = vector.broadcast %c14_i32_8 : i32 to vector<1x256xi32>
    %40 = arith.cmpi sle, %16, %39 : vector<1x256xi32>
    %41 = arith.extui %40 : vector<1x256xi1> to vector<1x256xi32>
    %42 = arith.sitofp %41 : vector<1x256xi32> to vector<1x256xf32>
    %c240_i32 = arith.constant 240 : i32
    %43 = vector.broadcast %c240_i32 : i32 to vector<1x256xi32>
    %44 = arith.cmpi slt, %0, %43 : vector<1x256xi32>
    %c1_i32_9 = arith.constant 1 : i32
    %45 = vector.broadcast %c1_i32_9 : i32 to vector<1x256xi32>
    %46 = arith.cmpi sge, %16, %45 : vector<1x256xi32>
    %47 = arith.andi %44, %46 : vector<1x256xi1>
    %48 = arith.extui %47 : vector<1x256xi1> to vector<1x256xi32>
    %49 = arith.sitofp %48 : vector<1x256xi32> to vector<1x256xf32>
    %c240_i32_10 = arith.constant 240 : i32
    %50 = vector.broadcast %c240_i32_10 : i32 to vector<1x256xi32>
    %51 = arith.cmpi slt, %0, %50 : vector<1x256xi32>
    %52 = arith.extui %51 : vector<1x256xi1> to vector<1x256xi32>
    %53 = arith.sitofp %52 : vector<1x256xi32> to vector<1x256xf32>
    %c240_i32_11 = arith.constant 240 : i32
    %54 = vector.broadcast %c240_i32_11 : i32 to vector<1x256xi32>
    %55 = arith.cmpi slt, %0, %54 : vector<1x256xi32>
    %c14_i32_12 = arith.constant 14 : i32
    %56 = vector.broadcast %c14_i32_12 : i32 to vector<1x256xi32>
    %57 = arith.cmpi sle, %16, %56 : vector<1x256xi32>
    %58 = arith.andi %55, %57 : vector<1x256xi1>
    %59 = arith.extui %58 : vector<1x256xi1> to vector<1x256xi32>
    %60 = arith.sitofp %59 : vector<1x256xi32> to vector<1x256xf32>
    %c0 = arith.constant 0 : index
    %c0_13 = arith.constant 0 : index
    %c0_14 = arith.constant 0 : index
    %61 = vector.load %arg1[%c0, %c0_13, %c0_14] : memref<1x8x256xf32, #tpu.memory_space<vmem>>, vector<1x8x256xf32>
    %62 = vector.shape_cast %61 : vector<1x8x256xf32> to vector<8x256xf32>
    %c17_i32 = arith.constant 17 : i32
    %63 = tpu.dynamic_rotate %62 by %c17_i32 dim 1 : vector<8x256xf32>, i32 -> vector<8x256xf32>
    %64 = vector.broadcast %23 : vector<1x256xf32> to vector<8x256xf32>
    %65 = arith.mulf %63, %64 : vector<8x256xf32>
    %c16_i32_15 = arith.constant 16 : i32
    %66 = tpu.dynamic_rotate %62 by %c16_i32_15 dim 1 : vector<8x256xf32>, i32 -> vector<8x256xf32>
    %67 = vector.broadcast %27 : vector<1x256xf32> to vector<8x256xf32>
    %68 = arith.mulf %66, %67 : vector<8x256xf32>
    %c15_i32 = arith.constant 15 : i32
    %69 = tpu.dynamic_rotate %62 by %c15_i32 dim 1 : vector<8x256xf32>, i32 -> vector<8x256xf32>
    %70 = vector.broadcast %34 : vector<1x256xf32> to vector<8x256xf32>
    %71 = arith.mulf %69, %70 : vector<8x256xf32>
    %c1_i32_16 = arith.constant 1 : i32
    %72 = tpu.dynamic_rotate %62 by %c1_i32_16 dim 1 : vector<8x256xf32>, i32 -> vector<8x256xf32>
    %73 = vector.broadcast %38 : vector<1x256xf32> to vector<8x256xf32>
    %74 = arith.mulf %72, %73 : vector<8x256xf32>
    %c255_i32 = arith.constant 255 : i32
    %75 = tpu.dynamic_rotate %62 by %c255_i32 dim 1 : vector<8x256xf32>, i32 -> vector<8x256xf32>
    %76 = vector.broadcast %42 : vector<1x256xf32> to vector<8x256xf32>
    %77 = arith.mulf %75, %76 : vector<8x256xf32>
    %c241_i32 = arith.constant 241 : i32
    %78 = tpu.dynamic_rotate %62 by %c241_i32 dim 1 : vector<8x256xf32>, i32 -> vector<8x256xf32>
    %79 = vector.broadcast %49 : vector<1x256xf32> to vector<8x256xf32>
    %80 = arith.mulf %78, %79 : vector<8x256xf32>
    %c240_i32_17 = arith.constant 240 : i32
    %81 = tpu.dynamic_rotate %62 by %c240_i32_17 dim 1 : vector<8x256xf32>, i32 -> vector<8x256xf32>
    %82 = vector.broadcast %53 : vector<1x256xf32> to vector<8x256xf32>
    %83 = arith.mulf %81, %82 : vector<8x256xf32>
    %c239_i32 = arith.constant 239 : i32
    %84 = tpu.dynamic_rotate %62 by %c239_i32 dim 1 : vector<8x256xf32>, i32 -> vector<8x256xf32>
    %85 = vector.broadcast %60 : vector<1x256xf32> to vector<8x256xf32>
    %86 = arith.mulf %84, %85 : vector<8x256xf32>
    %87 = tpu.concatenate %65, %68, %71, %74, %62, %77, %80, %83, %86 in 0 : vector<8x256xf32>, vector<8x256xf32>, vector<8x256xf32>, vector<8x256xf32>, vector<8x256xf32>, vector<8x256xf32>, vector<8x256xf32>, vector<8x256xf32>, vector<8x256xf32> -> vector<72x256xf32>
    %88 = arith.truncf %87 : vector<72x256xf32> to vector<72x256xbf16>
    %c0_18 = arith.constant 0 : index
    %c0_19 = arith.constant 0 : index
    %89 = vector.load %arg2[%c0_18, %c0_19] : memref<8x72xbf16, #tpu.memory_space<vmem>>, vector<8x72xbf16>
    %cst = arith.constant dense<0.000000e+00> : vector<8x256xf32>
    %90 = tpu.matmul %89, %88, %cst {dimension_numbers = #tpu.dot_dimension_numbers<[1], [0], [0], [1], [0, 0, 1, 1], [], []>} : vector<8x72xbf16>, vector<72x256xbf16>, vector<8x256xf32> -> vector<8x256xf32>
    %c0_20 = arith.constant 0 : index
    %c0_21 = arith.constant 0 : index
    %91 = vector.load %arg3[%c0_20, %c0_21] : memref<8x1xf32, #tpu.memory_space<vmem>>, vector<8x1xf32>
    %92 = vector.broadcast %91 : vector<8x1xf32> to vector<8x256xf32>
    %93 = arith.addf %90, %92 : vector<8x256xf32>
    %cst_22 = arith.constant 0.000000e+00 : f32
    %94 = vector.broadcast %cst_22 : f32 to vector<8x256xf32>
    %95 = arith.maximumf %93, %94 : vector<8x256xf32>
    %c17_i32_23 = arith.constant 17 : i32
    %96 = tpu.dynamic_rotate %95 by %c17_i32_23 dim 1 : vector<8x256xf32>, i32 -> vector<8x256xf32>
    %97 = vector.broadcast %23 : vector<1x256xf32> to vector<8x256xf32>
    %98 = arith.mulf %96, %97 : vector<8x256xf32>
    %c16_i32_24 = arith.constant 16 : i32
    %99 = tpu.dynamic_rotate %95 by %c16_i32_24 dim 1 : vector<8x256xf32>, i32 -> vector<8x256xf32>
    %100 = vector.broadcast %27 : vector<1x256xf32> to vector<8x256xf32>
    %101 = arith.mulf %99, %100 : vector<8x256xf32>
    %c15_i32_25 = arith.constant 15 : i32
    %102 = tpu.dynamic_rotate %95 by %c15_i32_25 dim 1 : vector<8x256xf32>, i32 -> vector<8x256xf32>
    %103 = vector.broadcast %34 : vector<1x256xf32> to vector<8x256xf32>
    %104 = arith.mulf %102, %103 : vector<8x256xf32>
    %c1_i32_26 = arith.constant 1 : i32
    %105 = tpu.dynamic_rotate %95 by %c1_i32_26 dim 1 : vector<8x256xf32>, i32 -> vector<8x256xf32>
    %106 = vector.broadcast %38 : vector<1x256xf32> to vector<8x256xf32>
    %107 = arith.mulf %105, %106 : vector<8x256xf32>
    %c255_i32_27 = arith.constant 255 : i32
    %108 = tpu.dynamic_rotate %95 by %c255_i32_27 dim 1 : vector<8x256xf32>, i32 -> vector<8x256xf32>
    %109 = vector.broadcast %42 : vector<1x256xf32> to vector<8x256xf32>
    %110 = arith.mulf %108, %109 : vector<8x256xf32>
    %c241_i32_28 = arith.constant 241 : i32
    %111 = tpu.dynamic_rotate %95 by %c241_i32_28 dim 1 : vector<8x256xf32>, i32 -> vector<8x256xf32>
    %112 = vector.broadcast %49 : vector<1x256xf32> to vector<8x256xf32>
    %113 = arith.mulf %111, %112 : vector<8x256xf32>
    %c240_i32_29 = arith.constant 240 : i32
    %114 = tpu.dynamic_rotate %95 by %c240_i32_29 dim 1 : vector<8x256xf32>, i32 -> vector<8x256xf32>
    %115 = vector.broadcast %53 : vector<1x256xf32> to vector<8x256xf32>
    %116 = arith.mulf %114, %115 : vector<8x256xf32>
    %c239_i32_30 = arith.constant 239 : i32
    %117 = tpu.dynamic_rotate %95 by %c239_i32_30 dim 1 : vector<8x256xf32>, i32 -> vector<8x256xf32>
    %118 = vector.broadcast %60 : vector<1x256xf32> to vector<8x256xf32>
    %119 = arith.mulf %117, %118 : vector<8x256xf32>
    %120 = tpu.concatenate %98, %101, %104, %107, %95, %110, %113, %116, %119 in 0 : vector<8x256xf32>, vector<8x256xf32>, vector<8x256xf32>, vector<8x256xf32>, vector<8x256xf32>, vector<8x256xf32>, vector<8x256xf32>, vector<8x256xf32>, vector<8x256xf32> -> vector<72x256xf32>
    %121 = arith.truncf %120 : vector<72x256xf32> to vector<72x256xbf16>
    %c0_31 = arith.constant 0 : index
    %c0_32 = arith.constant 0 : index
    %122 = vector.load %arg4[%c0_31, %c0_32] : memref<8x72xbf16, #tpu.memory_space<vmem>>, vector<8x72xbf16>
    %cst_33 = arith.constant dense<0.000000e+00> : vector<8x256xf32>
    %123 = tpu.matmul %122, %121, %cst_33 {dimension_numbers = #tpu.dot_dimension_numbers<[1], [0], [0], [1], [0, 0, 1, 1], [], []>} : vector<8x72xbf16>, vector<72x256xbf16>, vector<8x256xf32> -> vector<8x256xf32>
    %c0_34 = arith.constant 0 : index
    %c0_35 = arith.constant 0 : index
    %124 = vector.load %arg5[%c0_34, %c0_35] : memref<8x1xf32, #tpu.memory_space<vmem>>, vector<8x1xf32>
    %125 = vector.broadcast %124 : vector<8x1xf32> to vector<8x256xf32>
    %126 = arith.addf %123, %125 : vector<8x256xf32>
    %cst_36 = arith.constant 0.000000e+00 : f32
    %127 = vector.broadcast %cst_36 : f32 to vector<8x256xf32>
    %128 = arith.maximumf %126, %127 : vector<8x256xf32>
    %c17_i32_37 = arith.constant 17 : i32
    %129 = tpu.dynamic_rotate %128 by %c17_i32_37 dim 1 : vector<8x256xf32>, i32 -> vector<8x256xf32>
    %130 = vector.broadcast %23 : vector<1x256xf32> to vector<8x256xf32>
    %131 = arith.mulf %129, %130 : vector<8x256xf32>
    %c16_i32_38 = arith.constant 16 : i32
    %132 = tpu.dynamic_rotate %128 by %c16_i32_38 dim 1 : vector<8x256xf32>, i32 -> vector<8x256xf32>
    %133 = vector.broadcast %27 : vector<1x256xf32> to vector<8x256xf32>
    %134 = arith.mulf %132, %133 : vector<8x256xf32>
    %c15_i32_39 = arith.constant 15 : i32
    %135 = tpu.dynamic_rotate %128 by %c15_i32_39 dim 1 : vector<8x256xf32>, i32 -> vector<8x256xf32>
    %136 = vector.broadcast %34 : vector<1x256xf32> to vector<8x256xf32>
    %137 = arith.mulf %135, %136 : vector<8x256xf32>
    %c1_i32_40 = arith.constant 1 : i32
    %138 = tpu.dynamic_rotate %128 by %c1_i32_40 dim 1 : vector<8x256xf32>, i32 -> vector<8x256xf32>
    %139 = vector.broadcast %38 : vector<1x256xf32> to vector<8x256xf32>
    %140 = arith.mulf %138, %139 : vector<8x256xf32>
    %c255_i32_41 = arith.constant 255 : i32
    %141 = tpu.dynamic_rotate %128 by %c255_i32_41 dim 1 : vector<8x256xf32>, i32 -> vector<8x256xf32>
    %142 = vector.broadcast %42 : vector<1x256xf32> to vector<8x256xf32>
    %143 = arith.mulf %141, %142 : vector<8x256xf32>
    %c241_i32_42 = arith.constant 241 : i32
    %144 = tpu.dynamic_rotate %128 by %c241_i32_42 dim 1 : vector<8x256xf32>, i32 -> vector<8x256xf32>
    %145 = vector.broadcast %49 : vector<1x256xf32> to vector<8x256xf32>
    %146 = arith.mulf %144, %145 : vector<8x256xf32>
    %c240_i32_43 = arith.constant 240 : i32
    %147 = tpu.dynamic_rotate %128 by %c240_i32_43 dim 1 : vector<8x256xf32>, i32 -> vector<8x256xf32>
    %148 = vector.broadcast %53 : vector<1x256xf32> to vector<8x256xf32>
    %149 = arith.mulf %147, %148 : vector<8x256xf32>
    %c239_i32_44 = arith.constant 239 : i32
    %150 = tpu.dynamic_rotate %128 by %c239_i32_44 dim 1 : vector<8x256xf32>, i32 -> vector<8x256xf32>
    %151 = vector.broadcast %60 : vector<1x256xf32> to vector<8x256xf32>
    %152 = arith.mulf %150, %151 : vector<8x256xf32>
    %153 = tpu.concatenate %131, %134, %137, %140, %128, %143, %146, %149, %152 in 0 : vector<8x256xf32>, vector<8x256xf32>, vector<8x256xf32>, vector<8x256xf32>, vector<8x256xf32>, vector<8x256xf32>, vector<8x256xf32>, vector<8x256xf32>, vector<8x256xf32> -> vector<72x256xf32>
    %154 = arith.truncf %153 : vector<72x256xf32> to vector<72x256xbf16>
    %c0_45 = arith.constant 0 : index
    %c0_46 = arith.constant 0 : index
    %155 = vector.load %arg6[%c0_45, %c0_46] : memref<8x72xbf16, #tpu.memory_space<vmem>>, vector<8x72xbf16>
    %cst_47 = arith.constant dense<0.000000e+00> : vector<8x256xf32>
    %156 = tpu.matmul %155, %154, %cst_47 {dimension_numbers = #tpu.dot_dimension_numbers<[1], [0], [0], [1], [0, 0, 1, 1], [], []>} : vector<8x72xbf16>, vector<72x256xbf16>, vector<8x256xf32> -> vector<8x256xf32>
    %c0_48 = arith.constant 0 : index
    %c0_49 = arith.constant 0 : index
    %157 = vector.load %arg7[%c0_48, %c0_49] : memref<8x1xf32, #tpu.memory_space<vmem>>, vector<8x1xf32>
    %158 = vector.broadcast %157 : vector<8x1xf32> to vector<8x256xf32>
    %159 = arith.addf %156, %158 : vector<8x256xf32>
    %cst_50 = arith.constant 0.000000e+00 : f32
    %160 = vector.broadcast %cst_50 : f32 to vector<8x256xf32>
    %161 = arith.maximumf %159, %160 : vector<8x256xf32>
    %c0_51 = arith.constant 0 : index
    %c0_52 = arith.constant 0 : index
    %c0_53 = arith.constant 0 : index
    %162 = vector.load %arg8[%c0_51, %c0_52, %c0_53] : memref<1x8x256xf32, #tpu.memory_space<vmem>>, vector<1x8x256xf32>
    %163 = vector.shape_cast %162 : vector<1x8x256xf32> to vector<8x256xf32>
    %164 = vector.shape_cast %161 : vector<8x256xf32> to vector<1x8x256xf32>
    tpu.vector_store %arg8[%c0_51, %c0_52, %c0_53], %164 {strides = array<i32>} : memref<1x8x256xf32, #tpu.memory_space<vmem>>, vector<1x8x256xf32>,
    return
  }
  func.func @transform_0(%arg0: i32) -> (i32, i32, i32) {
    %c0_i32 = arith.constant 0 : i32
    %c0_i32_0 = arith.constant 0 : i32
    %c0_i32_1 = arith.constant 0 : i32
    return %arg0, %c0_i32, %c0_i32_0 : i32, i32, i32
  }
  func.func @transform_1(%arg0: i32) -> (i32, i32) {
    %c0_i32 = arith.constant 0 : i32
    %c0_i32_0 = arith.constant 0 : i32
    %c0_i32_1 = arith.constant 0 : i32
    return %c0_i32, %c0_i32_0 : i32, i32
  }
  func.func @transform_2(%arg0: i32) -> (i32, i32) {
    %c0_i32 = arith.constant 0 : i32
    %c0_i32_0 = arith.constant 0 : i32
    %c0_i32_1 = arith.constant 0 : i32
    return %c0_i32, %c0_i32_0 : i32, i32
  }
  func.func @transform_3(%arg0: i32) -> (i32, i32) {
    %c0_i32 = arith.constant 0 : i32
    %c0_i32_0 = arith.constant 0 : i32
    %c0_i32_1 = arith.constant 0 : i32
    return %c0_i32, %c0_i32_0 : i32, i32
  }
  func.func @transform_4(%arg0: i32) -> (i32, i32) {
    %c0_i32 = arith.constant 0 : i32
    %c0_i32_0 = arith.constant 0 : i32
    %c0_i32_1 = arith.constant 0 : i32
    return %c0_i32, %c0_i32_0 : i32, i32
  }
  func.func @transform_5(%arg0: i32) -> (i32, i32) {
    %c0_i32 = arith.constant 0 : i32
    %c0_i32_0 = arith.constant 0 : i32
    %c0_i32_1 = arith.constant 0 : i32
    return %c0_i32, %c0_i32_0 : i32, i32
  }
  func.func @transform_6(%arg0: i32) -> (i32, i32) {
    %c0_i32 = arith.constant 0 : i32
    %c0_i32_0 = arith.constant 0 : i32
    %c0_i32_1 = arith.constant 0 : i32
    return %c0_i32, %c0_i32_0 : i32, i32
  }
  func.func @transform_7(%arg0: i32) -> (i32, i32, i32) {
    %c0_i32 = arith.constant 0 : i32
    %c0_i32_0 = arith.constant 0 : i32
    %c0_i32_1 = arith.constant 0 : i32
    return %arg0, %c0_i32, %c0_i32_0 : i32, i32, i32
  }
}

</mosaic_0001>

<llo_original>
// kernel: segnet_dec_forward.1
$region0: #{segnet_dec_forward.1}
  #allocation0 [shape = 'u32[]', space=smem, size = 0x4, offset = 0x4, fixed_abs, tag = 'smem constant byte address 0x4 - core index']
  #allocation1 [shape = 'u32[144,128]{1,0:T(1,128)}', space=vmem, size = 0x12000, scoped, tag = 'internal scratch']
  %s0 = inlined_call_operand.vmem [shape: f32[2,8,256], index: 0, kind: input, shape index: {}]
  %s1 = inlined_call_operand.vmem [shape: bf16[8,72], index: 1, kind: input, shape index: {}]
  %s2 = inlined_call_operand.vmem [shape: f32[8,1], index: 2, kind: input, shape index: {}]
  %s3 = inlined_call_operand.vmem [shape: bf16[8,72], index: 3, kind: input, shape index: {}]
  %s4 = inlined_call_operand.vmem [shape: f32[8,1], index: 4, kind: input, shape index: {}]
  %s5 = inlined_call_operand.vmem [shape: bf16[8,72], index: 5, kind: input, shape index: {}]
  %s6 = inlined_call_operand.vmem [shape: f32[8,1], index: 6, kind: input, shape index: {}]
  %s7 = inlined_call_operand.vmem [shape: f32[2,8,256], index: 7, kind: output, shape index: {}]
  %s8 = sld [smem:[#allocation0]]
  $region61: #{segnet_dec_forward.1} parent=0
    _
  %s10 = ssub.s32 1, %s8
  %s11 = scalar_select 0, %s10, %s8
  loop: start=0, step=1, limit=4
  $region2: #{segnet_dec_forward.1} parent=0 // loop_pre_header
    _
  $region3: #{segnet_dec_forward.1} parent=0 // loop_header
    %s13 = sphi 0, %s17
    %p14 = scmp.ge.s32.totalorder %s13, 4
    %s23 = sphi 0, %s25
    %s26 = sphi 0, %s23
    %s27 = sphi 0, %s26
    %s43 = sphi 0, %s27
    %s47 = sphi 0, %s47
    %s49 = sphi 0, %s47
    %s50 = sphi 0, %s49
    %s64 = sphi 0, %s50
    %s68 = sphi 0, %s68
    %s70 = sphi 0, %s68
    %s71 = sphi 0, %s70
    %s85 = sphi 0, %s71
    %s89 = sphi 0, %s89
    %s91 = sphi 0, %s89
    %s92 = sphi 0, %s91
    %s106 = sphi 0, %s92
    %s110 = sphi 0, %s110
    %s112 = sphi 0, %s110
    %s113 = sphi 0, %s112
    %s127 = sphi 0, %s113
    %s131 = sphi 0, %s131
    %s133 = sphi 0, %s131
    %s134 = sphi 0, %s133
    %s148 = sphi 0, %s134
    %s152 = sphi 0, %s152
    %s154 = sphi 0, %s152
    %s155 = sphi 0, %s154
    %s169 = sphi 0, %s155
    %s175 = sphi 0, %s177
    %s178 = sphi 0, %s175
    %s179 = sphi 0, %s178
    %s195 = sphi 0, %s179
  $region4: #{segnet_dec_forward.1} parent=0 // loop_header_branch
    %16 = sbr.rel (%p14) target = $region8
  $region5: #{segnet_dec_forward.1} parent=0 // loop_body
    %s18 = ssub.s32 %s13, 1
    %s19 = ssub.s32 %s13, 2
    %s20 = sadd.s32 %s13, 1
    %s21 = ssub.s32 %s13, %s20
    %p22 = scmp.eq.s32.totalorder %s21, 0
    %s24 = sadd.s32 %s23, 1
    %s25 = scalar_select %p22, %s23, %s24
    %p28 = pneg %p22
    %p29 = scmp.eq.s32.totalorder %s13, 1
    %p30 = por %p28, %p29
    %p31 = scmp.ne.s32.totalorder %s23, %s26
    %p32 = scmp.eq.s32.totalorder %s13, 0
    %p33 = por %p31, %p32
    %p34 = scmp.ne.s32.totalorder %s23, %s26
    %p35 = scmp.eq.s32.totalorder %s18, 1
    %p36 = por %p34, %p35
    %p37 = scmp.ne.s32.totalorder %s26, %s27
    %p38 = scmp.eq.s32.totalorder %s18, 0
    %p39 = por %p37, %p38
    %p40 = scmp.ne.s32.totalorder %s26, %s27
    %p41 = scmp.eq.s32.totalorder %s19, 1
    %p42 = por %p40, %p41
    %p44 = scmp.ne.s32.totalorder %s27, %s43
    %p45 = scmp.eq.s32.totalorder %s19, 0
    %p46 = por %p44, %p45
    %s48 = sadd.s32 %s47, 1
    %p51 = scmp.eq.s32.totalorder %s13, 1
    %p52 = scmp.ne.s32.totalorder %s47, %s49
    %p53 = scmp.eq.s32.totalorder %s13, 0
    %p54 = por %p52, %p53
    %p55 = scmp.ne.s32.totalorder %s47, %s49
    %p56 = scmp.eq.s32.totalorder %s18, 1
    %p57 = por %p55, %p56
    %p58 = scmp.ne.s32.totalorder %s49, %s50
    %p59 = scmp.eq.s32.totalorder %s18, 0
    %p60 = por %p58, %p59
    %p61 = scmp.ne.s32.totalorder %s49, %s50
    %p62 = scmp.eq.s32.totalorder %s19, 1
    %p63 = por %p61, %p62
    %p65 = scmp.ne.s32.totalorder %s50, %s64
    %p66 = scmp.eq.s32.totalorder %s19, 0
    %p67 = por %p65, %p66
    %s69 = sadd.s32 %s68, 1
    %p72 = scmp.eq.s32.totalorder %s13, 1
    %p73 = scmp.ne.s32.totalorder %s68, %s70
    %p74 = scmp.eq.s32.totalorder %s13, 0
    %p75 = por %p73, %p74
    %p76 = scmp.ne.s32.totalorder %s68, %s70
    %p77 = scmp.eq.s32.totalorder %s18, 1
    %p78 = por %p76, %p77
    %p79 = scmp.ne.s32.totalorder %s70, %s71
    %p80 = scmp.eq.s32.totalorder %s18, 0
    %p81 = por %p79, %p80
    %p82 = scmp.ne.s32.totalorder %s70, %s71
    %p83 = scmp.eq.s32.totalorder %s19, 1
    %p84 = por %p82, %p83
    %p86 = scmp.ne.s32.totalorder %s71, %s85
    %p87 = scmp.eq.s32.totalorder %s19, 0
    %p88 = por %p86, %p87
    %s90 = sadd.s32 %s89, 1
    %p93 = scmp.eq.s32.totalorder %s13, 1
    %p94 = scmp.ne.s32.totalorder %s89, %s91
    %p95 = scmp.eq.s32.totalorder %s13, 0
    %p96 = por %p94, %p95
    %p97 = scmp.ne.s32.totalorder %s89, %s91
    %p98 = scmp.eq.s32.totalorder %s18, 1
    %p99 = por %p97, %p98
    %p100 = scmp.ne.s32.totalorder %s91, %s92
    %p101 = scmp.eq.s32.totalorder %s18, 0
    %p102 = por %p100, %p101
    %p103 = scmp.ne.s32.totalorder %s91, %s92
    %p104 = scmp.eq.s32.totalorder %s19, 1
    %p105 = por %p103, %p104
    %p107 = scmp.ne.s32.totalorder %s92, %s106
    %p108 = scmp.eq.s32.totalorder %s19, 0
    %p109 = por %p107, %p108
    %s111 = sadd.s32 %s110, 1
    %p114 = scmp.eq.s32.totalorder %s13, 1
    %p115 = scmp.ne.s32.totalorder %s110, %s112
    %p116 = scmp.eq.s32.totalorder %s13, 0
    %p117 = por %p115, %p116
    %p118 = scmp.ne.s32.totalorder %s110, %s112
    %p119 = scmp.eq.s32.totalorder %s18, 1
    %p120 = por %p118, %p119
    %p121 = scmp.ne.s32.totalorder %s112, %s113
    %p122 = scmp.eq.s32.totalorder %s18, 0
    %p123 = por %p121, %p122
    %p124 = scmp.ne.s32.totalorder %s112, %s113
    %p125 = scmp.eq.s32.totalorder %s19, 1
    %p126 = por %p124, %p125
    %p128 = scmp.ne.s32.totalorder %s113, %s127
    %p129 = scmp.eq.s32.totalorder %s19, 0
    %p130 = por %p128, %p129
    %s132 = sadd.s32 %s131, 1
    %p135 = scmp.eq.s32.totalorder %s13, 1
    %p136 = scmp.ne.s32.totalorder %s131, %s133
    %p137 = scmp.eq.s32.totalorder %s13, 0
    %p138 = por %p136, %p137
    %p139 = scmp.ne.s32.totalorder %s131, %s133
    %p140 = scmp.eq.s32.totalorder %s18, 1
    %p141 = por %p139, %p140
    %p142 = scmp.ne.s32.totalorder %s133, %s134
    %p143 = scmp.eq.s32.totalorder %s18, 0
    %p144 = por %p142, %p143
    %p145 = scmp.ne.s32.totalorder %s133, %s134
    %p146 = scmp.eq.s32.totalorder %s19, 1
    %p147 = por %p145, %p146
    %p149 = scmp.ne.s32.totalorder %s134, %s148
    %p150 = scmp.eq.s32.totalorder %s19, 0
    %p151 = por %p149, %p150
    %s153 = sadd.s32 %s152, 1
    %p156 = scmp.eq.s32.totalorder %s13, 1
    %p157 = scmp.ne.s32.totalorder %s152, %s154
    %p158 = scmp.eq.s32.totalorder %s13, 0
    %p159 = por %p157, %p158
    %p160 = scmp.ne.s32.totalorder %s152, %s154
    %p161 = scmp.eq.s32.totalorder %s18, 1
    %p162 = por %p160, %p161
    %p163 = scmp.ne.s32.totalorder %s154, %s155
    %p164 = scmp.eq.s32.totalorder %s18, 0
    %p165 = por %p163, %p164
    %p166 = scmp.ne.s32.totalorder %s154, %s155
    %p167 = scmp.eq.s32.totalorder %s19, 1
    %p168 = por %p166, %p167
    %p170 = scmp.ne.s32.totalorder %s155, %s169
    %p171 = scmp.eq.s32.totalorder %s19, 0
    %p172 = por %p170, %p171
    %s173 = ssub.s32 %s13, %s20
    %p174 = scmp.eq.s32.totalorder %s173, 0
    %s176 = sadd.s32 %s175, 1
    %s177 = scalar_select %p174, %s175, %s176
    %p180 = pneg %p174
    %p181 = scmp.eq.s32.totalorder %s13, 1
    %p182 = por %p180, %p181
    %p183 = scmp.ne.s32.totalorder %s175, %s178
    %p184 = scmp.eq.s32.totalorder %s13, 0
    %p185 = por %p183, %p184
    %p186 = scmp.ne.s32.totalorder %s175, %s178
    %p187 = scmp.eq.s32.totalorder %s18, 1
    %p188 = por %p186, %p187
    %p189 = scmp.ne.s32.totalorder %s178, %s179
    %p190 = scmp.eq.s32.totalorder %s18, 0
    %p191 = por %p189, %p190
    %p192 = scmp.ne.s32.totalorder %s178, %s179
    %p193 = scmp.eq.s32.totalorder %s19, 1
    %p194 = por %p192, %p193
    %p196 = scmp.ne.s32.totalorder %s179, %s195
    %p197 = scmp.eq.s32.totalorder %s19, 0
    %p198 = por %p196, %p197
    %p199 = scmp.le.s32.totalorder 1, %s13
    %p200 = scmp.lt.s32.totalorder %s13, 3
    %p201 = pnand %p199, %p200
    %p202 = pneg %p201
    // Predicated region
    $region9: #{segnet_dec_forward.1} parent=5 // pred_check
      _
    $region10: #{segnet_dec_forward.1} parent=5 // pred_check_branch
      %204 = sbr.rel (%p201) target = $region12
    $region11: #{segnet_dec_forward.1} parent=5 // pred_region
      %s205 = ssub.s32 %s13, 1
      // Predicated region
      $region13: #{segnet_dec_forward.1} parent=11 // pred_check
        %p206 = pneg %p60
      $region14: #{segnet_dec_forward.1} parent=11 // pred_check_branch
        %208 = sbr.rel (%p206) target = $region16
      $region15: #{segnet_dec_forward.1} parent=11 // pred_region
        _
      $region16: #{segnet_dec_forward.1} parent=11 // pred_fallthru
        _
      // Predicated region
      $region17: #{segnet_dec_forward.1} parent=11 // pred_check
        %p209 = pneg %p81
      $region18: #{segnet_dec_forward.1} parent=11 // pred_check_branch
        %211 = sbr.rel (%p209) target = $region20
      $region19: #{segnet_dec_forward.1} parent=11 // pred_region
        _
      $region20: #{segnet_dec_forward.1} parent=11 // pred_fallthru
        _
      // Predicated region
      $region21: #{segnet_dec_forward.1} parent=11 // pred_check
        %p212 = pneg %p102
      $region22: #{segnet_dec_forward.1} parent=11 // pred_check_branch
        %214 = sbr.rel (%p212) target = $region24
      $region23: #{segnet_dec_forward.1} parent=11 // pred_region
        _
      $region24: #{segnet_dec_forward.1} parent=11 // pred_fallthru
        _
      // Predicated region
      $region25: #{segnet_dec_forward.1} parent=11 // pred_check
        %p215 = pneg %p123
      $region26: #{segnet_dec_forward.1} parent=11 // pred_check_branch
        %217 = sbr.rel (%p215) target = $region28
      $region27: #{segnet_dec_forward.1} parent=11 // pred_region
        _
      $region28: #{segnet_dec_forward.1} parent=11 // pred_fallthru
        _
      // Predicated region
      $region29: #{segnet_dec_forward.1} parent=11 // pred_check
        %p218 = pneg %p144
      $region30: #{segnet_dec_forward.1} parent=11 // pred_check_branch
        %220 = sbr.rel (%p218) target = $region32
      $region31: #{segnet_dec_forward.1} parent=11 // pred_region
        _
      $region32: #{segnet_dec_forward.1} parent=11 // pred_fallthru
        _
      // Predicated region
      $region33: #{segnet_dec_forward.1} parent=11 // pred_check
        %p221 = pneg %p165
      $region34: #{segnet_dec_forward.1} parent=11 // pred_check_branch
        %223 = sbr.rel (%p221) target = $region36
      $region35: #{segnet_dec_forward.1} parent=11 // pred_region
        _
      $region36: #{segnet_dec_forward.1} parent=11 // pred_fallthru
        _
    $region12: #{segnet_dec_forward.1} parent=5 // pred_fallthru
      _
    %p224 = scmp.lt.s32.totalorder %s13, 2
    // Predicated region
    $region37: #{segnet_dec_forward.1} parent=5 // pred_check
      %p225 = pneg %p224
    $region38: #{segnet_dec_forward.1} parent=5 // pred_check_branch
      %227 = sbr.rel (%p225) target = $region40
    $region39: #{segnet_dec_forward.1} parent=5 // pred_region
      // Predicated region
      $region41: #{segnet_dec_forward.1} parent=39 // pred_check
        %p228 = pneg %p33
      $region42: #{segnet_dec_forward.1} parent=39 // pred_check_branch
        %230 = sbr.rel (%p228) target = $region44
      $region43: #{segnet_dec_forward.1} parent=39 // pred_region
        %p231 = scmp.lt.s32.totalorder %s13, 1
        %s232 = scalar_select %p231, %s13, 1
        %s233 = smul.addr %s232, 2
        %s234 = smul.addr %s233, 8
        %s235 = scalar_lea.vmem %s0, %s234
      $region44: #{segnet_dec_forward.1} parent=39 // pred_fallthru
        _
    $region40: #{segnet_dec_forward.1} parent=5 // pred_fallthru
      _
    %p236 = scmp.le.s32.totalorder 1, %s13
    %p237 = scmp.lt.s32.totalorder %s13, 3
    %p238 = pnand %p236, %p237
    %p239 = pneg %p238
    // Predicated region
    $region45: #{segnet_dec_forward.1} parent=5 // pred_check
      _
    $region46: #{segnet_dec_forward.1} parent=5 // pred_check_branch
      %241 = sbr.rel (%p238) target = $region48
    $region47: #{segnet_dec_forward.1} parent=5 // pred_region
      %s242 = ssub.s32 %s13, 1
      %p243 = scmp.lt.s32.totalorder %s18, 1
      %s244 = scalar_select %p243, %s18, 1
      %s245 = smul.addr %s244, 2
      %s246 = smul.addr %s245, 8
      %s247 = scalar_lea.vmem %s0, %s246
      %p248 = pneg %p39
      %p249 = pneg %p36
      %p250 = pneg %p60
      %p251 = pneg %p57
      %p252 = pneg %p81
      %p253 = pneg %p78
      %p254 = pneg %p102
      %p255 = pneg %p99
      %p256 = pneg %p123
      %p257 = pneg %p120
      %p258 = pneg %p144
      %p259 = pneg %p141
      %p260 = pneg %p165
      %p261 = pneg %p162
      %p262 = pneg %p191
      %p263 = pneg %p188
      %p264 = scmp.lt.s32.totalorder %s18, 1
      %s265 = scalar_select %p264, %s18, 1
      %s266 = smul.addr %s265, 2
      %s267 = smul.addr %s266, 8
      %s268 = scalar_lea.vmem %s7, %s267
      %p269 = scmp.lt.s32.totalorder %s18, 1
      %s270 = scalar_select %p269, %s18, 1
      %s271 = smul.addr %s270, 2
      %s272 = smul.addr %s271, 8
      %s273 = scalar_lea.vmem %s0, %s272
      %p274 = scmp.lt.s32.totalorder %s18, 1
      %s275 = scalar_select %p274, %s18, 1
      %s276 = smul.addr %s275, 2
      %s277 = smul.addr %s276, 8
      %s278 = scalar_lea.vmem %s7, %s277
      %v280 = vlaneseq
      %v281 = vand.u32 %v280, 127
      %v282 = vadd.s32 %v281, 128
      %vm283 = vcmp.lt.s32.totalorder %v281, 0
      %v284 = vsub.s32 0, %v281
      %v285 = vsel %vm283, %v284, %v281
      %v286 = vshrl.u32 %v285, 4
      %v287 = vand.u32 %v285, 15
      %v288 = vsub.s32 0, %v287
      %v289 = vsel %vm283, %v288, %v287
      %vm290 = vcmp.lt.s32.totalorder %v282, 0
      %v291 = vsub.s32 0, %v282
      %v292 = vsel %vm290, %v291, %v282
      %v293 = vshrl.u32 %v292, 4
      %v294 = vand.u32 %v292, 15
      %v295 = vsub.s32 0, %v294
      %v296 = vsel %vm290, %v295, %v294
      %vm297 = vcmp.ne.s32.totalorder %v289, 0
      %vm298 = vcmp.ne.s32.totalorder %v296, 0
      %vm299 = vcmp.lt.s32.totalorder %v289, 0
      %vm300 = vcmp.lt.s32.totalorder %v296, 0
      %vm301 = vmand %vm299, %vm297
      %vm302 = vmand %vm300, %vm298
      %v303 = vadd.s32 %v289, 16
      %v304 = vadd.s32 %v296, 16
      %v305 = vsel %vm301, %v303, %v289
      %v306 = vsel %vm302, %v304, %v296
      %vm307 = vcmp.ge.s32.totalorder %v281, 16
      %vm308 = vcmp.ge.s32.totalorder %v282, 16
      %vm309 = vcmp.ge.s32.totalorder %v305, 1
      %vm310 = vcmp.ge.s32.totalorder %v306, 1
      %vm311 = vmand %vm307, %vm309
      %vm312 = vmand %vm308, %vm310
      %v313 = vsel %vm311, 1, 0
      %v314 = vsel %vm312, 1, 0
      %v315 = vcvt.s32.f32 %v313
      %v316 = vcvt.s32.f32 %v314
      %v317 = vsel %vm307, 1, 0
      %v318 = vsel %vm308, 1, 0
      %v319 = vcvt.s32.f32 %v317
      %v320 = vcvt.s32.f32 %v318
      %vm321 = vcmp.le.s32.totalorder %v305, 14
      %vm322 = vcmp.le.s32.totalorder %v306, 14
      %vm323 = vmand %vm307, %vm321
      %vm324 = vmand %vm308, %vm322
      %v325 = vsel %vm323, 1, 0
      %v326 = vsel %vm324, 1, 0
      %v327 = vcvt.s32.f32 %v325
      %v328 = vcvt.s32.f32 %v326
      %v329 = vsel %vm309, 1, 0
      %v330 = vsel %vm310, 1, 0
      %v331 = vcvt.s32.f32 %v329
      %v332 = vcvt.s32.f32 %v330
      %v333 = vsel %vm321, 1, 0
      %v334 = vsel %vm322, 1, 0
      %v335 = vcvt.s32.f32 %v333
      %v336 = vcvt.s32.f32 %v334
      %vm337 = vcmp.lt.s32.totalorder %v281, 240
      %vm338 = vcmp.lt.s32.totalorder %v282, 240
      %vm339 = vmand %vm337, %vm309
      %vm340 = vmand %vm338, %vm310
      %v341 = vsel %vm339, 1, 0
      %v342 = vsel %vm340, 1, 0
      %v343 = vcvt.s32.f32 %v341
      %v344 = vcvt.s32.f32 %v342
      %v345 = vsel %vm337, 1, 0
      %v346 = vsel %vm338, 1, 0
      %v347 = vcvt.s32.f32 %v345
      %v348 = vcvt.s32.f32 %v346
      %vm349 = vmand %vm337, %vm321
      %vm350 = vmand %vm338, %vm322
      %v351 = vsel %vm349, 1, 0
      %v352 = vsel %vm350, 1, 0
      %v353 = vcvt.s32.f32 %v351
      %v354 = vcvt.s32.f32 %v352
      %v355 = vld [vmem:[%s273] sm:$0xff]
      %v356 = vld [vmem:[%s273 + $0x8] sm:$0xff]
      %357 = vrot.lane.b32.xlu0 %v355, 17
      %v358 = vpop.permute.xlu0 %357
      %359 = vrot.lane.b32.xlu0 %v356, 17
      %v360 = vpop.permute.xlu0 %359
      %vm361 = vcmp.lt.s32.totalorder %v281, 17
      %v362 = vsel %vm361, %v358, %v360
      %v363 = vsel %vm361, %v360, %v358
      %v364 = vmul.f32 %v363, %v315
      %v365 = vmul.f32 %v362, %v316
      %366 = vrot.lane.b32.xlu0 %v355, 16
      %v367 = vpop.permute.xlu0 %366
      %368 = vrot.lane.b32.xlu0 %v356, 16
      %v369 = vpop.permute.xlu0 %368
      %vm370 = vcmp.lt.s32.totalorder %v281, 16
      %v371 = vsel %vm370, %v367, %v369
      %v372 = vsel %vm370, %v369, %v367
      %v373 = vmul.f32 %v372, %v319
      %v374 = vmul.f32 %v371, %v320
      %375 = vrot.lane.b32.xlu0 %v355, 15
      %v376 = vpop.permute.xlu0 %375
      %377 = vrot.lane.b32.xlu0 %v356, 15
      %v378 = vpop.permute.xlu0 %377
      %vm379 = vcmp.lt.s32.totalorder %v281, 15
      %v380 = vsel %vm379, %v376, %v378
      %v381 = vsel %vm379, %v378, %v376
      %v382 = vmul.f32 %v381, %v327
      %v383 = vmul.f32 %v380, %v328
      %384 = vrot.lane.b32.xlu0 %v355, 1
      %v385 = vpop.permute.xlu0 %384
      %386 = vrot.lane.b32.xlu0 %v356, 1
      %v387 = vpop.permute.xlu0 %386
      %vm388 = vcmp.lt.s32.totalorder %v281, 1
      %v389 = vsel %vm388, %v385, %v387
      %v390 = vsel %vm388, %v387, %v385
      %v391 = vmul.f32 %v390, %v331
      %v392 = vmul.f32 %v389, %v332
      %393 = vrot.lane.b32.xlu0 %v355, 127
      %v394 = vpop.permute.xlu0 %393
      %395 = vrot.lane.b32.xlu0 %v356, 127
      %v396 = vpop.permute.xlu0 %395
      %vm397 = vcmp.lt.s32.totalorder %v281, 127
      %v398 = vsel %vm397, %v394, %v396
      %v399 = vsel %vm397, %v396, %v394
      %v400 = vmul.f32 %v398, %v335
      %v401 = vmul.f32 %v399, %v336
      %402 = vrot.lane.b32.xlu0 %v355, 113
      %v403 = vpop.permute.xlu0 %402
      %404 = vrot.lane.b32.xlu0 %v356, 113
      %v405 = vpop.permute.xlu0 %404
      %vm406 = vcmp.lt.s32.totalorder %v281, 113
      %v407 = vsel %vm406, %v403, %v405
      %v408 = vsel %vm406, %v405, %v403
      %v409 = vmul.f32 %v407, %v343
      %v410 = vmul.f32 %v408, %v344
      %411 = vrot.lane.b32.xlu0 %v355, 112
      %v412 = vpop.permute.xlu0 %411
      %413 = vrot.lane.b32.xlu0 %v356, 112
      %v414 = vpop.permute.xlu0 %413
      %vm415 = vcmp.lt.s32.totalorder %v281, 112
      %v416 = vsel %vm415, %v412, %v414
      %v417 = vsel %vm415, %v414, %v412
      %v418 = vmul.f32 %v416, %v347
      %v419 = vmul.f32 %v417, %v348
      %420 = vrot.lane.b32.xlu0 %v355, 111
      %v421 = vpop.permute.xlu0 %420
      %422 = vrot.lane.b32.xlu0 %v356, 111
      %v423 = vpop.permute.xlu0 %422
      %vm424 = vcmp.lt.s32.totalorder %v281, 111
      %v425 = vsel %vm424, %v421, %v423
      %v426 = vsel %vm424, %v423, %v421
      %v427 = vmul.f32 %v425, %v353
      %v428 = vmul.f32 %v426, %v354
      %v429 = vpack.c.bf16 %v373, %v364
      %v430 = vpack.c.bf16 %v374, %v365
      %v431 = vpack.c.bf16 %v391, %v382
      %v432 = vpack.c.bf16 %v392, %v383
      %v433 = vpack.c.bf16 %v400, %v355
      %v434 = vpack.c.bf16 %v401, %v356
      %v435 = vpack.c.bf16 %v418, %v409
      %v436 = vpack.c.bf16 %v419, %v410
      %v437 = vpack.c.bf16 %v427, %v427
      %v438 = vpack.c.bf16 %v428, %v428
      %v439 = vld [vmem:[%s1] sm:$0xf]
      %v440 = vld [vmem:[%s2] sm:$0xff]
      %442 = vset.pattern.permute.xlu0 0
      %443 = vperm.xlu0 %442, %v440
      %v444 = vpop.permute.xlu0 %443
      %vm446 = vcmask 588800
      %v448 = vsel %vm446, %v439, 0
      %vm450 = vcmask 1043456
      %v452 = vsel %vm450, %v437, 0
      %v455 = vsel %vm450, %v438, 0
      %457 = vmatprep.subr.bf16.mxu0 0
      %458 = vmatpush1.bf16.msra.mxu0 0
      %459 = vmatprep.subr.bf16.mxu0 0
      %460 = vmatpush1.bf16.msra.mxu0 0
      %461 = vmatprep.subr.bf16.mxu0 0
      %462 = vmatpush1.bf16.msra.mxu0 0
      %463 = vmatprep.subr.bf16.mxu0 %v455
      %464 = vmatpush1.bf16.msra.mxu0 %v452
      %465 = vmatprep.subr.bf16.mxu0 %v436
      %466 = vmatpush1.bf16.msra.mxu0 %v435
      %467 = vmatprep.subr.bf16.mxu0 %v434
      %468 = vmatpush1.bf16.msra.mxu0 %v433
      %469 = vmatprep.subr.bf16.mxu0 %v432
      %470 = vmatpush1.bf16.msra.mxu0 %v431
      %471 = vmatprep.subr.bf16.mxu0 %v430
      %472 = vmatpush1.bf16.msra.mxu0 %v429
      %473 = vmatprep.subr.bf16.mxu0 0
      %474 = vmatpush2.bf16.msra.mxu0 0
      %475 = vmatprep.subr.bf16.mxu0 0
      %476 = vmatpush2.bf16.msra.mxu0 0
      %477 = vmatprep.subr.bf16.mxu0 0
      %478 = vmatpush2.bf16.msra.mxu0 0
      %479 = vmatprep.subr.bf16.mxu0 0
      %480 = vmatpush2.bf16.msra.mxu0 0
      %481 = vmatprep.subr.bf16.mxu0 0
      %482 = vmatpush2.bf16.msra.mxu0 0
      %483 = vmatprep.subr.bf16.mxu0 0
      %484 = vmatpush2.bf16.msra.mxu0 0
      %485 = vmatprep.subr.bf16.mxu0 0
      %486 = vmatpush2.bf16.msra.mxu0 0
      %487 = vmatprep.subr.bf16.mxu0 0
      %488 = vmatpush2.bf16.msra.mxu0 0
      %489 = vmatprep.mubr.bf16.mxu0 0
      %490 = vmatmul.mubr.bf16.gmra.mxu0 %v448
      %v491 = vpop.f32.mrf.mxu0
      %v492 = vadd.f32 %v444, %v491
      %v493 = vpop.f32.mrf.mxu0
      %v494 = vadd.f32 %v444, %v493
      %v495 = vpop.f32.mrf.mxu0
      %v496 = vpop.f32.mrf.mxu0
      %497 = vdwg.mxu0
      %v498 = vmax.f32 %v492, 0.0
      %v499 = vmax.f32 %v494, 0.0
      %500 = vrot.lane.b32.xlu0 %v498, 17
      %v501 = vpop.permute.xlu0 %500
      %502 = vrot.lane.b32.xlu0 %v499, 17
      %v503 = vpop.permute.xlu0 %502
      %v504 = vsel %vm361, %v501, %v503
      %v505 = vsel %vm361, %v503, %v501
      %v506 = vmul.f32 %v505, %v315
      %v507 = vmul.f32 %v504, %v316
      %508 = vrot.lane.b32.xlu0 %v498, 16
      %v509 = vpop.permute.xlu0 %508
      %510 = vrot.lane.b32.xlu0 %v499, 16
      %v511 = vpop.permute.xlu0 %510
      %v512 = vsel %vm370, %v509, %v511
      %v513 = vsel %vm370, %v511, %v509
      %v514 = vmul.f32 %v513, %v319
      %v515 = vmul.f32 %v512, %v320
      %516 = vrot.lane.b32.xlu0 %v498, 15
      %v517 = vpop.permute.xlu0 %516
      %518 = vrot.lane.b32.xlu0 %v499, 15
      %v519 = vpop.permute.xlu0 %518
      %v520 = vsel %vm379, %v517, %v519
      %v521 = vsel %vm379, %v519, %v517
      %v522 = vmul.f32 %v521, %v327
      %v523 = vmul.f32 %v520, %v328
      %524 = vrot.lane.b32.xlu0 %v498, 1
      %v525 = vpop.permute.xlu0 %524
      %526 = vrot.lane.b32.xlu0 %v499, 1
      %v527 = vpop.permute.xlu0 %526
      %v528 = vsel %vm388, %v525, %v527
      %v529 = vsel %vm388, %v527, %v525
      %v530 = vmul.f32 %v529, %v331
      %v531 = vmul.f32 %v528, %v332
      %532 = vrot.lane.b32.xlu0 %v498, 127
      %v533 = vpop.permute.xlu0 %532
      %534 = vrot.lane.b32.xlu0 %v499, 127
      %v535 = vpop.permute.xlu0 %534
      %v536 = vsel %vm397, %v533, %v535
      %v537 = vsel %vm397, %v535, %v533
      %v538 = vmul.f32 %v536, %v335
      %v539 = vmul.f32 %v537, %v336
      %540 = vrot.lane.b32.xlu0 %v498, 113
      %v541 = vpop.permute.xlu0 %540
      %542 = vrot.lane.b32.xlu0 %v499, 113
      %v543 = vpop.permute.xlu0 %542
      %v544 = vsel %vm406, %v541, %v543
      %v545 = vsel %vm406, %v543, %v541
      %v546 = vmul.f32 %v544, %v343
      %v547 = vmul.f32 %v545, %v344
      %548 = vrot.lane.b32.xlu0 %v498, 112
      %v549 = vpop.permute.xlu0 %548
      %550 = vrot.lane.b32.xlu0 %v499, 112
      %v551 = vpop.permute.xlu0 %550
      %v552 = vsel %vm415, %v549, %v551
      %v553 = vsel %vm415, %v551, %v549
      %v554 = vmul.f32 %v552, %v347
      %v555 = vmul.f32 %v553, %v348
      %556 = vrot.lane.b32.xlu0 %v498, 111
      %v557 = vpop.permute.xlu0 %556
      %558 = vrot.lane.b32.xlu0 %v499, 111
      %v559 = vpop.permute.xlu0 %558
      %v560 = vsel %vm424, %v557, %v559
      %v561 = vsel %vm424, %v559, %v557
      %v562 = vmul.f32 %v560, %v353
      %v563 = vmul.f32 %v561, %v354
      %v564 = vpack.c.bf16 %v514, %v506
      %v565 = vpack.c.bf16 %v515, %v507
      %v566 = vpack.c.bf16 %v530, %v522
      %v567 = vpack.c.bf16 %v531, %v523
      %v568 = vpack.c.bf16 %v538, %v498
      %v569 = vpack.c.bf16 %v539, %v499
      %v570 = vpack.c.bf16 %v554, %v546
      %v571 = vpack.c.bf16 %v555, %v547
      %v572 = vpack.c.bf16 %v562, %v562
      %v573 = vpack.c.bf16 %v563, %v563
      %v574 = vld [vmem:[%s3] sm:$0xf]
      %v575 = vld [vmem:[%s4] sm:$0xff]
      %577 = vset.pattern.permute.xlu0 0
      %578 = vperm.xlu0 %577, %v575
      %v579 = vpop.permute.xlu0 %578
      %v582 = vsel %vm446, %v574, 0
      %v585 = vsel %vm450, %v572, 0
      %v588 = vsel %vm450, %v573, 0
      %590 = vmatprep.subr.bf16.mxu0 0
      %591 = vmatpush1.bf16.msra.mxu0 0
      %592 = vmatprep.subr.bf16.mxu0 0
      %593 = vmatpush1.bf16.msra.mxu0 0
      %594 = vmatprep.subr.bf16.mxu0 0
      %595 = vmatpush1.bf16.msra.mxu0 0
      %596 = vmatprep.subr.bf16.mxu0 %v588
      %597 = vmatpush1.bf16.msra.mxu0 %v585
      %598 = vmatprep.subr.bf16.mxu0 %v571
      %599 = vmatpush1.bf16.msra.mxu0 %v570
      %600 = vmatprep.subr.bf16.mxu0 %v569
      %601 = vmatpush1.bf16.msra.mxu0 %v568
      %602 = vmatprep.subr.bf16.mxu0 %v567
      %603 = vmatpush1.bf16.msra.mxu0 %v566
      %604 = vmatprep.subr.bf16.mxu0 %v565
      %605 = vmatpush1.bf16.msra.mxu0 %v564
      %606 = vmatprep.subr.bf16.mxu0 0
      %607 = vmatpush2.bf16.msra.mxu0 0
      %608 = vmatprep.subr.bf16.mxu0 0
      %609 = vmatpush2.bf16.msra.mxu0 0
      %610 = vmatprep.subr.bf16.mxu0 0
      %611 = vmatpush2.bf16.msra.mxu0 0
      %612 = vmatprep.subr.bf16.mxu0 0
      %613 = vmatpush2.bf16.msra.mxu0 0
      %614 = vmatprep.subr.bf16.mxu0 0
      %615 = vmatpush2.bf16.msra.mxu0 0
      %616 = vmatprep.subr.bf16.mxu0 0
      %617 = vmatpush2.bf16.msra.mxu0 0
      %618 = vmatprep.subr.bf16.mxu0 0
      %619 = vmatpush2.bf16.msra.mxu0 0
      %620 = vmatprep.subr.bf16.mxu0 0
      %621 = vmatpush2.bf16.msra.mxu0 0
      %622 = vmatprep.mubr.bf16.mxu0 0
      %623 = vmatmul.mubr.bf16.gmra.mxu0 %v582
      %v624 = vpop.f32.mrf.mxu0
      %v625 = vadd.f32 %v579, %v624
      %v626 = vpop.f32.mrf.mxu0
      %v627 = vadd.f32 %v579, %v626
      %v628 = vpop.f32.mrf.mxu0
      %v629 = vpop.f32.mrf.mxu0
      %630 = vdwg.mxu0
      %v631 = vmax.f32 %v625, 0.0
      %v632 = vmax.f32 %v627, 0.0
      %633 = vrot.lane.b32.xlu0 %v631, 17
      %v634 = vpop.permute.xlu0 %633
      %635 = vrot.lane.b32.xlu0 %v632, 17
      %v636 = vpop.permute.xlu0 %635
      %v637 = vsel %vm361, %v634, %v636
      %v638 = vsel %vm361, %v636, %v634
      %v639 = vmul.f32 %v638, %v315
      %v640 = vmul.f32 %v637, %v316
      %641 = vrot.lane.b32.xlu0 %v631, 16
      %v642 = vpop.permute.xlu0 %641
      %643 = vrot.lane.b32.xlu0 %v632, 16
      %v644 = vpop.permute.xlu0 %643
      %v645 = vsel %vm370, %v642, %v644
      %v646 = vsel %vm370, %v644, %v642
      %v647 = vmul.f32 %v646, %v319
      %v648 = vmul.f32 %v645, %v320
      %649 = vrot.lane.b32.xlu0 %v631, 15
      %v650 = vpop.permute.xlu0 %649
      %651 = vrot.lane.b32.xlu0 %v632, 15
      %v652 = vpop.permute.xlu0 %651
      %v653 = vsel %vm379, %v650, %v652
      %v654 = vsel %vm379, %v652, %v650
      %v655 = vmul.f32 %v654, %v327
      %v656 = vmul.f32 %v653, %v328
      %657 = vrot.lane.b32.xlu0 %v631, 1
      %v658 = vpop.permute.xlu0 %657
      %659 = vrot.lane.b32.xlu0 %v632, 1
      %v660 = vpop.permute.xlu0 %659
      %v661 = vsel %vm388, %v658, %v660
      %v662 = vsel %vm388, %v660, %v658
      %v663 = vmul.f32 %v662, %v331
      %v664 = vmul.f32 %v661, %v332
      %665 = vrot.lane.b32.xlu0 %v631, 127
      %v666 = vpop.permute.xlu0 %665
      %667 = vrot.lane.b32.xlu0 %v632, 127
      %v668 = vpop.permute.xlu0 %667
      %v669 = vsel %vm397, %v666, %v668
      %v670 = vsel %vm397, %v668, %v666
      %v671 = vmul.f32 %v669, %v335
      %v672 = vmul.f32 %v670, %v336
      %673 = vrot.lane.b32.xlu0 %v631, 113
      %v674 = vpop.permute.xlu0 %673
      %675 = vrot.lane.b32.xlu0 %v632, 113
      %v676 = vpop.permute.xlu0 %675
      %v677 = vsel %vm406, %v674, %v676
      %v678 = vsel %vm406, %v676, %v674
      %v679 = vmul.f32 %v677, %v343
      %v680 = vmul.f32 %v678, %v344
      %681 = vrot.lane.b32.xlu0 %v631, 112
      %v682 = vpop.permute.xlu0 %681
      %683 = vrot.lane.b32.xlu0 %v632, 112
      %v684 = vpop.permute.xlu0 %683
      %v685 = vsel %vm415, %v682, %v684
      %v686 = vsel %vm415, %v684, %v682
      %v687 = vmul.f32 %v685, %v347
      %v688 = vmul.f32 %v686, %v348
      %689 = vrot.lane.b32.xlu0 %v631, 111
      %v690 = vpop.permute.xlu0 %689
      %691 = vrot.lane.b32.xlu0 %v632, 111
      %v692 = vpop.permute.xlu0 %691
      %v693 = vsel %vm424, %v690, %v692
      %v694 = vsel %vm424, %v692, %v690
      %v695 = vmul.f32 %v693, %v353
      %v696 = vmul.f32 %v694, %v354
      %v697 = vpack.c.bf16 %v647, %v639
      %v698 = vpack.c.bf16 %v648, %v640
      %v699 = vpack.c.bf16 %v663, %v655
      %v700 = vpack.c.bf16 %v664, %v656
      %v701 = vpack.c.bf16 %v671, %v631
      %v702 = vpack.c.bf16 %v672, %v632
      %v703 = vpack.c.bf16 %v687, %v679
      %v704 = vpack.c.bf16 %v688, %v680
      %v705 = vpack.c.bf16 %v695, %v695
      %v706 = vpack.c.bf16 %v696, %v696
      %v707 = vld [vmem:[%s5] sm:$0xf]
      %v708 = vld [vmem:[%s6] sm:$0xff]
      %710 = vset.pattern.permute.xlu0 0
      %711 = vperm.xlu0 %710, %v708
      %v712 = vpop.permute.xlu0 %711
      %v715 = vsel %vm446, %v707, 0
      %v718 = vsel %vm450, %v705, 0
      %v721 = vsel %vm450, %v706, 0
      %723 = vmatprep.subr.bf16.mxu0 0
      %724 = vmatpush1.bf16.msra.mxu0 0
      %725 = vmatprep.subr.bf16.mxu0 0
      %726 = vmatpush1.bf16.msra.mxu0 0
      %727 = vmatprep.subr.bf16.mxu0 0
      %728 = vmatpush1.bf16.msra.mxu0 0
      %729 = vmatprep.subr.bf16.mxu0 %v721
      %730 = vmatpush1.bf16.msra.mxu0 %v718
      %731 = vmatprep.subr.bf16.mxu0 %v704
      %732 = vmatpush1.bf16.msra.mxu0 %v703
      %733 = vmatprep.subr.bf16.mxu0 %v702
      %734 = vmatpush1.bf16.msra.mxu0 %v701
      %735 = vmatprep.subr.bf16.mxu0 %v700
      %736 = vmatpush1.bf16.msra.mxu0 %v699
      %737 = vmatprep.subr.bf16.mxu0 %v698
      %738 = vmatpush1.bf16.msra.mxu0 %v697
      %739 = vmatprep.subr.bf16.mxu0 0
      %740 = vmatpush2.bf16.msra.mxu0 0
      %741 = vmatprep.subr.bf16.mxu0 0
      %742 = vmatpush2.bf16.msra.mxu0 0
      %743 = vmatprep.subr.bf16.mxu0 0
      %744 = vmatpush2.bf16.msra.mxu0 0
      %745 = vmatprep.subr.bf16.mxu0 0
      %746 = vmatpush2.bf16.msra.mxu0 0
      %747 = vmatprep.subr.bf16.mxu0 0
      %748 = vmatpush2.bf16.msra.mxu0 0
      %749 = vmatprep.subr.bf16.mxu0 0
      %750 = vmatpush2.bf16.msra.mxu0 0
      %751 = vmatprep.subr.bf16.mxu0 0
      %752 = vmatpush2.bf16.msra.mxu0 0
      %753 = vmatprep.subr.bf16.mxu0 0
      %754 = vmatpush2.bf16.msra.mxu0 0
      %755 = vmatprep.mubr.bf16.mxu0 0
      %756 = vmatmul.mubr.bf16.gmra.mxu0 %v715
      %v757 = vpop.f32.mrf.mxu0
      %v758 = vadd.f32 %v712, %v757
      %v759 = vpop.f32.mrf.mxu0
      %v760 = vadd.f32 %v712, %v759
      %v761 = vpop.f32.mrf.mxu0
      %v762 = vpop.f32.mrf.mxu0
      %763 = vdwg.mxu0
      %v764 = vmax.f32 %v758, 0.0
      %v765 = vmax.f32 %v760, 0.0
      %766 = vst [vmem:[%s278] sm:$0xff] %v764
      %767 = vst [vmem:[%s278 + $0x8] sm:$0xff] %v765
      %p768 = scmp.lt.s32.totalorder %s18, 1
      %s769 = scalar_select %p768, %s18, 1
      %s770 = smul.addr %s769, 2
      %s771 = smul.addr %s770, 8
      %s772 = scalar_lea.vmem %s7, %s771
      // Predicated region
      $region49: #{segnet_dec_forward.1} parent=47 // pred_check
        %p773 = pneg %p188
      $region50: #{segnet_dec_forward.1} parent=47 // pred_check_branch
        %775 = sbr.rel (%p773) target = $region52
      $region51: #{segnet_dec_forward.1} parent=47 // pred_region
        _
      $region52: #{segnet_dec_forward.1} parent=47 // pred_fallthru
        _
    $region48: #{segnet_dec_forward.1} parent=5 // pred_fallthru
      _
    %p776 = scmp.le.s32.totalorder 2, %s13
    // Predicated region
    $region53: #{segnet_dec_forward.1} parent=5 // pred_check
      %p777 = pneg %p776
    $region54: #{segnet_dec_forward.1} parent=5 // pred_check_branch
      %779 = sbr.rel (%p777) target = $region56
    $region55: #{segnet_dec_forward.1} parent=5 // pred_region
      %s780 = ssub.s32 %s13, 2
      // Predicated region
      $region57: #{segnet_dec_forward.1} parent=55 // pred_check
        %p781 = pneg %p194
      $region58: #{segnet_dec_forward.1} parent=55 // pred_check_branch
        %783 = sbr.rel (%p781) target = $region60
      $region59: #{segnet_dec_forward.1} parent=55 // pred_region
        %p784 = scmp.lt.s32.totalorder %s19, 1
        %s785 = scalar_select %p784, %s19, 1
        %s786 = smul.addr %s785, 2
        %s787 = smul.addr %s786, 8
        %s788 = scalar_lea.vmem %s7, %s787
      $region60: #{segnet_dec_forward.1} parent=55 // pred_fallthru
        _
    $region56: #{segnet_dec_forward.1} parent=5 // pred_fallthru
      _
  $region6: #{segnet_dec_forward.1} parent=0 // loop_footer
    %s17 = sadd.s32 1, %s13
  $region7: #{segnet_dec_forward.1} parent=0 // loop_footer_branch
    %12 = sbr.rel target = $region3
  $region8: #{segnet_dec_forward.1} parent=0 // loop_exit
    _

</llo_original>
